<compile_context>
chip_gen: v5e
topology: v5e:2x2
jax: 0.10.0
libtpu: 0.0.40
codegen_flags: <defaults>
</compile_context>

<pallas_src>
import functools

import jax
import jax.numpy as jnp
from jax.experimental import pallas as pl
from jax.experimental.pallas import tpu as pltpu


def _pad_kernel(code_ref, x_ref, o_ref, *, padding, H, W):
    """Replication-pad each lane's HxW patch and zero the padded borders that
    face the outside of the P x P patch grid (mirrors the PyTorch forward,
    including the single-row bottom zeroing asymmetry)."""
    p = padding
    Hp, Wp = H + 2 * p, W + 2 * p
    TN = o_ref.shape[-1]
    zero = jnp.zeros((), o_ref.dtype)

    code = code_ref[...]                       # (1, 1, TN) int32 per-lane flags
    is_top = (code & 1) != 0                   # patch sits on image's top row
    is_bot = (code & 2) != 0                   # bottom row of the patch grid
    is_left = (code & 4) != 0                  # leftmost column of the grid
    is_right = (code & 8) != 0                 # rightmost column of the grid

    xv = x_ref[...]                            # (H, W, TN)

    # ---- body rows p .. p+H-1 -------------------------------------------
    o_ref[p:p + H, p:p + W, :] = xv            # interior: one dense bulk store
    left_edge = xv[:, 0:1, :]                  # (H, 1, TN)
    right_edge = xv[:, W - 1:W, :]
    o_ref[p:p + H, 0:p, :] = jnp.where(
        is_left, zero, jnp.broadcast_to(left_edge, (H, p, TN)))
    o_ref[p:p + H, p + W:Wp, :] = jnp.where(
        is_right, zero, jnp.broadcast_to(right_edge, (H, p, TN)))

    # ---- top pad rows 0 .. p-1 (fully zeroed for top-row patches) --------
    top_row = xv[0:1, :, :]
    o_ref[0:p, p:p + W, :] = jnp.where(
        is_top, zero, jnp.broadcast_to(top_row, (p, W, TN)))
    o_ref[0:p, 0:p, :] = jnp.where(
        is_top | is_left, zero, jnp.broadcast_to(xv[0:1, 0:1, :], (p, p, TN)))
    o_ref[0:p, p + W:Wp, :] = jnp.where(
        is_top | is_right, zero,
        jnp.broadcast_to(xv[0:1, W - 1:W, :], (p, p, TN)))

    # ---- bottom pad rows p+H .. Hp-1 --------------------------------------
    # Only row Hp-p (local row 0 of the strip) is zeroed for bottom-row
    # patches — mirrors the PyTorch single-row write x[bot, :, Hp-p, :] = 0.
    r_local = jax.lax.broadcasted_iota(jnp.int32, (p, 1, 1), 0)
    bot_zero = is_bot & (r_local == 0)
    bot_row = xv[H - 1:H, :, :]
    o_ref[p + H:Hp, p:p + W, :] = jnp.where(
        bot_zero, zero, jnp.broadcast_to(bot_row, (p, W, TN)))
    o_ref[p + H:Hp, 0:p, :] = jnp.where(
        bot_zero | is_left, zero,
        jnp.broadcast_to(xv[H - 1:H, 0:1, :], (p, p, TN)))
    o_ref[p + H:Hp, p + W:Wp, :] = jnp.where(
        bot_zero | is_right, zero,
        jnp.broadcast_to(xv[H - 1:H, W - 1:W, :], (p, p, TN)))


def replication_pad2d(x, padding, num_patches):
    """Pallas forward: replication pad + patch-grid border zeroing (NCHW)."""
    b, C, H, W = x.shape
    P = num_patches
    p = padding
    assert b % (P * P) == 0, "batch must be a multiple of num_patches**2"
    Hp, Wp = H + 2 * p, W + 2 * p
    N = b * C
    itemsize = jnp.dtype(x.dtype).itemsize

    # Lane-dense relayout: NCHW -> (H, W, b*C). batch*channel rides the lane
    # axis so every vst is dense instead of a Wp-wide masked store.
    xt = jnp.transpose(x, (2, 3, 0, 1)).reshape(H, W, N)

    # Per-lane border code (bit0 top / bit1 bottom / bit2 left / bit3 right),
    # precomputed here so the kernel needs no integer div/mod on the VPU.
    q = (jnp.arange(N, dtype=jnp.int32) // C) % (P * P)
    row, col = q // P, q % P
    code = ((row == 0).astype(jnp.int32)
            | ((row == P - 1).astype(jnp.int32) << 1)
            | ((col == 0).astype(jnp.int32) << 2)
            | ((col == P - 1).astype(jnp.int32) << 3)).reshape(1, 1, N)

    # --- lane-tile selection ------------------------------------------------
    LANE = 128
    bytes_per_lane = (H * W + Hp * Wp) * itemsize + 4
    budget = 10 * 1024 * 1024                     # in+out tile bytes per step
    max_lanes = max(LANE, (budget // bytes_per_lane) // LANE * LANE)
    TN = N if N <= max_lanes else max_lanes       # full dim or multiple of 128
    if TN < N and N >= 4 * LANE and pl.cdiv(N, TN) < 4:
        # v7x has 2 TensorCores: keep >= 2 pipelined steps per core.
        TN = max(LANE, pl.cdiv(pl.cdiv(N, 4), LANE) * LANE)
    grid = (pl.cdiv(N, TN),)
    # TODO(synk): also tile H if a single lane's H*W plane ever exceeds the
    # per-step VMEM budget (not the case for patch-sized inputs).

    kernel = functools.partial(_pad_kernel, padding=p, H=H, W=W)
    in_bytes = H * W * N * itemsize + 4 * N
    out_bytes = Hp * Wp * N * itemsize
    out_t = pl.pallas_call(
        kernel,
        out_shape=jax.ShapeDtypeStruct((Hp, Wp, N), x.dtype),
        grid=grid,
        in_specs=[pl.BlockSpec((1, 1, TN), lambda i: (0, 0, i)),
                  pl.BlockSpec((H, W, TN), lambda i: (0, 0, i))],
        out_specs=pl.BlockSpec((Hp, Wp, TN), lambda i: (0, 0, i)),
        compiler_params=pltpu.CompilerParams(
            dimension_semantics=("parallel",),
            vmem_limit_bytes=32 * 1024 * 1024),
        cost_estimate=pl.CostEstimate(flops=0, transcendentals=0,
                                      bytes_accessed=in_bytes + out_bytes),
    )(code, xt)

    return jnp.transpose(out_t.reshape(Hp, Wp, b, C), (2, 3, 0, 1))


def get_error(padded_x, P):
    """Plain-JAX replica of PaddingModule.get_error (side-effect loss in the
    PyTorch module). Gather-heavy index bookkeeping, kept outside the kernel."""
    b, C, Hp, Wp = padded_x.shape
    B = b // P ** 2
    patch_h = Hp - 2
    patch_w = Wp - 2
    base = jnp.repeat(jnp.arange(0, b, P ** 2), P)              # length B*P
    vertical = [jnp.tile(jnp.arange(i * P, (i + 1) * P), B) + base for i in range(P)]
    horizontal = [jnp.arange(i, b, P) for i in range(P)]

    cat = lambda parts: jnp.concatenate(parts, axis=0)
    pred_top = cat([padded_x[idx, :, 0, 1:patch_w + 1] for idx in vertical[1:]])
    tgt_top = cat([padded_x[idx, :, patch_h, 1:patch_w + 1] for idx in vertical[:P - 1]])
    pred_bot = cat([padded_x[idx, :, patch_h + 1, 1:patch_w + 1] for idx in vertical[:P - 1]])
    tgt_bot = cat([padded_x[idx, :, 1, 1:patch_w + 1] for idx in vertical[1:]])
    pred_left = cat([padded_x[idx, :, 1:patch_h + 1, 0] for idx in horizontal[1:]])
    tgt_left = cat([padded_x[idx, :, 1:patch_h + 1, patch_w] for idx in horizontal[:P - 1]])
    pred_right = cat([padded_x[idx, :, 1:patch_h + 1, patch_w + 1] for idx in horizontal[:P - 1]])
    tgt_right = cat([padded_x[idx, :, 1:patch_h + 1, 1] for idx in horizontal[1:]])

    mse = lambda a, t: jnp.mean((a - t) ** 2)
    return (mse(pred_top, tgt_top) + mse(pred_bot, tgt_bot)
            + mse(pred_left, tgt_left) + mse(pred_right, tgt_right)) / 4


def reference_forward(x, padding, P):
    """Pure-JAX reference mirroring the PyTorch forward, for verification."""
    b, C, H, W = x.shape
    Hp, Wp = H + 2 * padding, W + 2 * padding
    xp = jnp.pad(x, ((0, 0), (0, 0), (padding, padding), (padding, padding)),
                 mode="edge")
    q = jnp.arange(b) % (P * P)
    row = (q // P)[:, None, None, None]
    col = (q % P)[:, None, None, None]
    r_idx = jnp.arange(Hp)[None, None, :, None]
    c_idx = jnp.arange(Wp)[None, None, None, :]
    mask = ((row == 0) & (r_idx < padding)) \
         | ((row == P - 1) & (r_idx == Hp - padding)) \
         | ((col == 0) & (c_idx < padding)) \
         | ((col == P - 1) & (c_idx >= Wp - padding))
    return jnp.where(mask, 0.0, xp)


if __name__ == "__main__":
    fwd = jax.jit(replication_pad2d, static_argnums=(1, 2))
    k0, k1 = jax.random.split(jax.random.PRNGKey(0))

    # Config 1: padding=1, P=2 (the configuration get_error assumes).
    padding, P, B, C, H, W = 1, 2, 2, 4, 16, 16
    b = B * P * P
    x = jax.random.normal(k0, (b, C, H, W), dtype=jnp.float32)
    out = jax.block_until_ready(fwd(x, padding, P))
    ref = reference_forward(x, padding, P)
    assert out.shape == (b, C, H + 2 * padding, W + 2 * padding), out.shape
    assert jnp.allclose(out, ref, atol=1e-6), "mismatch vs JAX reference (p=1, P=2)"
    loss = jax.block_until_ready(get_error(out, P))       # module's side-effect loss
    assert bool(jnp.isfinite(loss))

    # Config 2: exercise padding>1 / P>2 paths (broadcast strips + the
    # single-row bottom zeroing asymmetry).
    padding2, P2, B2, C2, H2, W2 = 2, 3, 1, 3, 8, 8
    b2 = B2 * P2 * P2
    x2 = jax.random.normal(k1, (b2, C2, H2, W2), dtype=jnp.float32)
    out2 = jax.block_until_ready(fwd(x2, padding2, P2))
    ref2 = reference_forward(x2, padding2, P2)
    assert jnp.allclose(out2, ref2, atol=1e-6), "mismatch vs JAX reference (p=2, P=3)"

    print("KERNEL_OK")
</pallas_src>

<mosaic_0001>
module attributes {stable_mosaic.version = 11 : i64} {
  func.func @_pad_kernel(%arg0: i32, %arg1: memref<1x1x32xi32, #tpu.memory_space<vmem>>, %arg2: memref<16x16x32xf32, #tpu.memory_space<vmem>>, %arg3: memref<18x18x32xf32, #tpu.memory_space<vmem>>) attributes {dimension_semantics = [#tpu.dimension_semantics<parallel>], iteration_bounds = array<i64: 1>, scalar_prefetch = 0 : i64, scratch_operands = 0 : i64, tpu.core_type = #tpu.core_type<tc>, window_params = [{transform_indices = @transform_0, window_bounds = array<i64: 1, 1, 32>}, {transform_indices = @transform_1, window_bounds = array<i64: 16, 16, 32>}, {transform_indices = @transform_2, window_bounds = array<i64: 18, 18, 32>}]} {
    %c0 = arith.constant 0 : index
    %c0_0 = arith.constant 0 : index
    %c0_1 = arith.constant 0 : index
    %0 = vector.load %arg1[%c0, %c0_0, %c0_1] : memref<1x1x32xi32, #tpu.memory_space<vmem>>, vector<1x1x32xi32>
    %c1_i32 = arith.constant 1 : i32
    %1 = vector.broadcast %c1_i32 : i32 to vector<1x1x32xi32>
    %2 = arith.andi %0, %1 : vector<1x1x32xi32>
    %c0_i32 = arith.constant 0 : i32
    %3 = vector.broadcast %c0_i32 : i32 to vector<1x1x32xi32>
    %4 = arith.cmpi ne, %2, %3 : vector<1x1x32xi32>
    %c2_i32 = arith.constant 2 : i32
    %5 = vector.broadcast %c2_i32 : i32 to vector<1x1x32xi32>
    %6 = arith.andi %0, %5 : vector<1x1x32xi32>
    %c0_i32_2 = arith.constant 0 : i32
    %7 = vector.broadcast %c0_i32_2 : i32 to vector<1x1x32xi32>
    %8 = arith.cmpi ne, %6, %7 : vector<1x1x32xi32>
    %c4_i32 = arith.constant 4 : i32
    %9 = vector.broadcast %c4_i32 : i32 to vector<1x1x32xi32>
    %10 = arith.andi %0, %9 : vector<1x1x32xi32>
    %c0_i32_3 = arith.constant 0 : i32
    %11 = vector.broadcast %c0_i32_3 : i32 to vector<1x1x32xi32>
    %12 = arith.cmpi ne, %10, %11 : vector<1x1x32xi32>
    %c8_i32 = arith.constant 8 : i32
    %13 = vector.broadcast %c8_i32 : i32 to vector<1x1x32xi32>
    %14 = arith.andi %0, %13 : vector<1x1x32xi32>
    %c0_i32_4 = arith.constant 0 : i32
    %15 = vector.broadcast %c0_i32_4 : i32 to vector<1x1x32xi32>
    %16 = arith.cmpi ne, %14, %15 : vector<1x1x32xi32>
    %c0_5 = arith.constant 0 : index
    %c0_6 = arith.constant 0 : index
    %c0_7 = arith.constant 0 : index
    %17 = vector.load %arg2[%c0_5, %c0_6, %c0_7] : memref<16x16x32xf32, #tpu.memory_space<vmem>>, vector<16x16x32xf32>
    %c1 = arith.constant 1 : index
    %c1_8 = arith.constant 1 : index
    %c0_9 = arith.constant 0 : index
    %18 = vector.load %arg3[%c1, %c1_8, %c0_9] : memref<18x18x32xf32, #tpu.memory_space<vmem>>, vector<16x16x32xf32>
    tpu.vector_store %arg3[%c1, %c1_8, %c0_9], %17 {strides = array<i32>} : memref<18x18x32xf32, #tpu.memory_space<vmem>>, vector<16x16x32xf32>,
    %19 = vector.extract_strided_slice %17 {offsets = [0, 0, 0], sizes = [16, 1, 32], strides = [1, 1, 1]} : vector<16x16x32xf32> to vector<16x1x32xf32>
    %20 = vector.extract_strided_slice %17 {offsets = [0, 15, 0], sizes = [16, 1, 32], strides = [1, 1, 1]} : vector<16x16x32xf32> to vector<16x1x32xf32>
    %cst = arith.constant 0.000000e+00 : f32
    %21 = vector.shape_cast %12 : vector<1x1x32xi1> to vector<1x1x32xi1>
    %22 = vector.broadcast %21 : vector<1x1x32xi1> to vector<16x1x32xi1>
    %23 = vector.broadcast %cst : f32 to vector<16x1x32xf32>
    %24 = arith.select %22, %23, %19 : vector<16x1x32xi1>, vector<16x1x32xf32>
    %c1_10 = arith.constant 1 : index
    %c0_11 = arith.constant 0 : index
    %c0_12 = arith.constant 0 : index
    %25 = vector.load %arg3[%c1_10, %c0_11, %c0_12] : memref<18x18x32xf32, #tpu.memory_space<vmem>>, vector<16x1x32xf32>
    tpu.vector_store %arg3[%c1_10, %c0_11, %c0_12], %24 {strides = array<i32>} : memref<18x18x32xf32, #tpu.memory_space<vmem>>, vector<16x1x32xf32>,
    %cst_13 = arith.constant 0.000000e+00 : f32
    %26 = vector.shape_cast %16 : vector<1x1x32xi1> to vector<1x1x32xi1>
    %27 = vector.broadcast %26 : vector<1x1x32xi1> to vector<16x1x32xi1>
    %28 = vector.broadcast %cst_13 : f32 to vector<16x1x32xf32>
    %29 = arith.select %27, %28, %20 : vector<16x1x32xi1>, vector<16x1x32xf32>
    %c1_14 = arith.constant 1 : index
    %c17 = arith.constant 17 : index
    %c0_15 = arith.constant 0 : index
    %30 = vector.load %arg3[%c1_14, %c17, %c0_15] : memref<18x18x32xf32, #tpu.memory_space<vmem>>, vector<16x1x32xf32>
    tpu.vector_store %arg3[%c1_14, %c17, %c0_15], %29 {strides = array<i32>} : memref<18x18x32xf32, #tpu.memory_space<vmem>>, vector<16x1x32xf32>,
    %31 = vector.extract_strided_slice %17 {offsets = [0, 0, 0], sizes = [1, 16, 32], strides = [1, 1, 1]} : vector<16x16x32xf32> to vector<1x16x32xf32>
    %cst_16 = arith.constant 0.000000e+00 : f32
    %32 = vector.shape_cast %4 : vector<1x1x32xi1> to vector<1x1x32xi1>
    %33 = vector.broadcast %32 : vector<1x1x32xi1> to vector<1x16x32xi1>
    %34 = vector.broadcast %cst_16 : f32 to vector<1x16x32xf32>
    %35 = arith.select %33, %34, %31 : vector<1x16x32xi1>, vector<1x16x32xf32>
    %c0_17 = arith.constant 0 : index
    %c1_18 = arith.constant 1 : index
    %c0_19 = arith.constant 0 : index
    %36 = vector.load %arg3[%c0_17, %c1_18, %c0_19] : memref<18x18x32xf32, #tpu.memory_space<vmem>>, vector<1x16x32xf32>
    tpu.vector_store %arg3[%c0_17, %c1_18, %c0_19], %35 {strides = array<i32>} : memref<18x18x32xf32, #tpu.memory_space<vmem>>, vector<1x16x32xf32>,
    %37 = arith.ori %4, %12 : vector<1x1x32xi1>
    %38 = vector.extract_strided_slice %17 {offsets = [0, 0, 0], sizes = [1, 1, 32], strides = [1, 1, 1]} : vector<16x16x32xf32> to vector<1x1x32xf32>
    %cst_20 = arith.constant 0.000000e+00 : f32
    %39 = vector.broadcast %cst_20 : f32 to vector<1x1x32xf32>
    %40 = arith.select %37, %39, %38 : vector<1x1x32xi1>, vector<1x1x32xf32>
    %c0_21 = arith.constant 0 : index
    %c0_22 = arith.constant 0 : index
    %c0_23 = arith.constant 0 : index
    %41 = vector.load %arg3[%c0_21, %c0_22, %c0_23] : memref<18x18x32xf32, #tpu.memory_space<vmem>>, vector<1x1x32xf32>
    tpu.vector_store %arg3[%c0_21, %c0_22, %c0_23], %40 {strides = array<i32>} : memref<18x18x32xf32, #tpu.memory_space<vmem>>, vector<1x1x32xf32>,
    %42 = arith.ori %4, %16 : vector<1x1x32xi1>
    %43 = vector.extract_strided_slice %17 {offsets = [0, 15, 0], sizes = [1, 1, 32], strides = [1, 1, 1]} : vector<16x16x32xf32> to vector<1x1x32xf32>
    %cst_24 = arith.constant 0.000000e+00 : f32
    %44 = vector.broadcast %cst_24 : f32 to vector<1x1x32xf32>
    %45 = arith.select %42, %44, %43 : vector<1x1x32xi1>, vector<1x1x32xf32>
    %c0_25 = arith.constant 0 : index
    %c17_26 = arith.constant 17 : index
    %c0_27 = arith.constant 0 : index
    %46 = vector.load %arg3[%c0_25, %c17_26, %c0_27] : memref<18x18x32xf32, #tpu.memory_space<vmem>>, vector<1x1x32xf32>
    tpu.vector_store %arg3[%c0_25, %c17_26, %c0_27], %45 {strides = array<i32>} : memref<18x18x32xf32, #tpu.memory_space<vmem>>, vector<1x1x32xf32>,
    %47 = tpu.iota {dimensions = array<i32: 0>} : vector<1x1x1xi32>
    %c0_i32_28 = arith.constant 0 : i32
    %48 = vector.broadcast %c0_i32_28 : i32 to vector<1x1x1xi32>
    %49 = arith.cmpi eq, %47, %48 : vector<1x1x1xi32>
    %50 = vector.broadcast %49 : vector<1x1x1xi1> to vector<1x1x32xi1>
    %51 = arith.andi %8, %50 : vector<1x1x32xi1>
    %52 = vector.extract_strided_slice %17 {offsets = [15, 0, 0], sizes = [1, 16, 32], strides = [1, 1, 1]} : vector<16x16x32xf32> to vector<1x16x32xf32>
    %cst_29 = arith.constant 0.000000e+00 : f32
    %53 = vector.shape_cast %51 : vector<1x1x32xi1> to vector<1x1x32xi1>
    %54 = vector.broadcast %53 : vector<1x1x32xi1> to vector<1x16x32xi1>
    %55 = vector.broadcast %cst_29 : f32 to vector<1x16x32xf32>
    %56 = arith.select %54, %55, %52 : vector<1x16x32xi1>, vector<1x16x32xf32>
    %c17_30 = arith.constant 17 : index
    %c1_31 = arith.constant 1 : index
    %c0_32 = arith.constant 0 : index
    %57 = vector.load %arg3[%c17_30, %c1_31, %c0_32] : memref<18x18x32xf32, #tpu.memory_space<vmem>>, vector<1x16x32xf32>
    tpu.vector_store %arg3[%c17_30, %c1_31, %c0_32], %56 {strides = array<i32>} : memref<18x18x32xf32, #tpu.memory_space<vmem>>, vector<1x16x32xf32>,
    %58 = arith.ori %51, %12 : vector<1x1x32xi1>
    %59 = vector.extract_strided_slice %17 {offsets = [15, 0, 0], sizes = [1, 1, 32], strides = [1, 1, 1]} : vector<16x16x32xf32> to vector<1x1x32xf32>
    %cst_33 = arith.constant 0.000000e+00 : f32
    %60 = vector.broadcast %cst_33 : f32 to vector<1x1x32xf32>
    %61 = arith.select %58, %60, %59 : vector<1x1x32xi1>, vector<1x1x32xf32>
    %c17_34 = arith.constant 17 : index
    %c0_35 = arith.constant 0 : index
    %c0_36 = arith.constant 0 : index
    %62 = vector.load %arg3[%c17_34, %c0_35, %c0_36] : memref<18x18x32xf32, #tpu.memory_space<vmem>>, vector<1x1x32xf32>
    tpu.vector_store %arg3[%c17_34, %c0_35, %c0_36], %61 {strides = array<i32>} : memref<18x18x32xf32, #tpu.memory_space<vmem>>, vector<1x1x32xf32>,
    %63 = arith.ori %51, %16 : vector<1x1x32xi1>
    %64 = vector.extract_strided_slice %17 {offsets = [15, 15, 0], sizes = [1, 1, 32], strides = [1, 1, 1]} : vector<16x16x32xf32> to vector<1x1x32xf32>
    %cst_37 = arith.constant 0.000000e+00 : f32
    %65 = vector.broadcast %cst_37 : f32 to vector<1x1x32xf32>
    %66 = arith.select %63, %65, %64 : vector<1x1x32xi1>, vector<1x1x32xf32>
    %c17_38 = arith.constant 17 : index
    %c17_39 = arith.constant 17 : index
    %c0_40 = arith.constant 0 : index
    %67 = vector.load %arg3[%c17_38, %c17_39, %c0_40] : memref<18x18x32xf32, #tpu.memory_space<vmem>>, vector<1x1x32xf32>
    tpu.vector_store %arg3[%c17_38, %c17_39, %c0_40], %66 {strides = array<i32>} : memref<18x18x32xf32, #tpu.memory_space<vmem>>, vector<1x1x32xf32>,
    return
  }
  func.func @transform_0(%arg0: i32) -> (i32, i32, i32) {
    %c0_i32 = arith.constant 0 : i32
    %c0_i32_0 = arith.constant 0 : i32
    %c0_i32_1 = arith.constant 0 : i32
    return %c0_i32, %c0_i32_0, %arg0 : i32, i32, i32
  }
  func.func @transform_1(%arg0: i32) -> (i32, i32, i32) {
    %c0_i32 = arith.constant 0 : i32
    %c0_i32_0 = arith.constant 0 : i32
    %c0_i32_1 = arith.constant 0 : i32
    return %c0_i32, %c0_i32_0, %arg0 : i32, i32, i32
  }
  func.func @transform_2(%arg0: i32) -> (i32, i32, i32) {
    %c0_i32 = arith.constant 0 : i32
    %c0_i32_0 = arith.constant 0 : i32
    %c0_i32_1 = arith.constant 0 : i32
    return %c0_i32, %c0_i32_0, %arg0 : i32, i32, i32
  }
}

</mosaic_0001>

<llo_original>
// kernel: replication_pad2d.1
$region0: #{replication_pad2d.1}
  #allocation0 [shape = 'u32[]', space=smem, size = 0x4, offset = 0x4, fixed_abs, tag = 'smem constant byte address 0x4 - core index']
  #allocation1 [shape = 'u32[72,128]{1,0:T(1,128)}', space=vmem, size = 0x9000, scoped, tag = 'internal scratch']
  %s0 = inlined_call_operand.vmem [shape: s32[1,1,32], index: 0, kind: input, shape index: {}]
  %s1 = inlined_call_operand.vmem [shape: f32[16,16,32], index: 1, kind: input, shape index: {}]
  %s2 = inlined_call_operand.vmem [shape: f32[18,18,32], index: 2, kind: output, shape index: {}]
  %s3 = sld [smem:[#allocation0]]
  $region18: #{replication_pad2d.1} parent=0
    _
  %s5 = ssub.s32 1, %s3
  %s6 = scalar_select 0, %s5, %s3
  // Predicated region
  $region2: #{replication_pad2d.1} parent=0 // pred_check
    _
  $region3: #{replication_pad2d.1} parent=0 // pred_check_branch
    %8 = sbr.rel (0) target = $region5
  $region4: #{replication_pad2d.1} parent=0 // pred_region
    _
  $region5: #{replication_pad2d.1} parent=0 // pred_fallthru
    _
  // Predicated region
  $region6: #{replication_pad2d.1} parent=0 // pred_check
    _
  $region7: #{replication_pad2d.1} parent=0 // pred_check_branch
    %10 = sbr.rel (0) target = $region9
  $region8: #{replication_pad2d.1} parent=0 // pred_region
    _
  $region9: #{replication_pad2d.1} parent=0 // pred_fallthru
    _
  %v11 = vld [vmem:[%s0] sm:$0x1]
  %v12 = vand.u32 %v11, 1
  %vm13 = vcmp.ne.s32.totalorder %v12, 0
  %v14 = vand.u32 %v11, 2
  %vm15 = vcmp.ne.s32.totalorder %v14, 0
  %v16 = vand.u32 %v11, 4
  %vm17 = vcmp.ne.s32.totalorder %v16, 0
  %v18 = vand.u32 %v11, 8
  %vm19 = vcmp.ne.s32.totalorder %v18, 0
  %v20 = vld [vmem:[%s1] sm:$0xff]
  %v21 = vld [vmem:[%s1 + $0x8] sm:$0xff]
  %v22 = vld [vmem:[%s1 + $0x10] sm:$0xff]
  %v23 = vld [vmem:[%s1 + $0x18] sm:$0xff]
  %v24 = vld [vmem:[%s1 + $0x20] sm:$0xff]
  %v25 = vld [vmem:[%s1 + $0x28] sm:$0xff]
  %v26 = vld [vmem:[%s1 + $0x30] sm:$0xff]
  %v27 = vld [vmem:[%s1 + $0x38] sm:$0xff]
  %v28 = vld [vmem:[%s1 + $0x40] sm:$0xff]
  %v29 = vld [vmem:[%s1 + $0x48] sm:$0xff]
  %v30 = vld [vmem:[%s1 + $0x50] sm:$0xff]
  %v31 = vld [vmem:[%s1 + $0x58] sm:$0xff]
  %v32 = vld [vmem:[%s1 + $0x60] sm:$0xff]
  %v33 = vld [vmem:[%s1 + $0x68] sm:$0xff]
  %v34 = vld [vmem:[%s1 + $0x70] sm:$0xff]
  %v35 = vld [vmem:[%s1 + $0x78] sm:$0xff]
  %v36 = vld [vmem:[%s1 + $0x80] sm:$0xff]
  %v37 = vld [vmem:[%s1 + $0x88] sm:$0xff]
  %v38 = vld [vmem:[%s1 + $0x90] sm:$0xff]
  %v39 = vld [vmem:[%s1 + $0x98] sm:$0xff]
  %v40 = vld [vmem:[%s1 + $0xa0] sm:$0xff]
  %v41 = vld [vmem:[%s1 + $0xa8] sm:$0xff]
  %v42 = vld [vmem:[%s1 + $0xb0] sm:$0xff]
  %v43 = vld [vmem:[%s1 + $0xb8] sm:$0xff]
  %v44 = vld [vmem:[%s1 + $0xc0] sm:$0xff]
  %v45 = vld [vmem:[%s1 + $0xc8] sm:$0xff]
  %v46 = vld [vmem:[%s1 + $0xd0] sm:$0xff]
  %v47 = vld [vmem:[%s1 + $0xd8] sm:$0xff]
  %v48 = vld [vmem:[%s1 + $0xe0] sm:$0xff]
  %v49 = vld [vmem:[%s1 + $0xe8] sm:$0xff]
  %v50 = vld [vmem:[%s1 + $0xf0] sm:$0xff]
  %v51 = vld [vmem:[%s1 + $0xf8] sm:$0xff]
  %s52 = scalar_lea.vmem %s2, 24
  %vm53 = vcmask 261120
  %54 = vst.msk [vmem:[%s52 + $0x1] sm:$0xff] %vm53, %v20
  %55 = vst.msk [vmem:[%s52 + $0x9] sm:$0xff] %vm53, %v21
  %56 = vst.msk [vmem:[%s52 + $0x19] sm:$0xff] %vm53, %v22
  %57 = vst.msk [vmem:[%s52 + $0x21] sm:$0xff] %vm53, %v23
  %58 = vst.msk [vmem:[%s52 + $0x31] sm:$0xff] %vm53, %v24
  %59 = vst.msk [vmem:[%s52 + $0x39] sm:$0xff] %vm53, %v25
  %60 = vst.msk [vmem:[%s52 + $0x49] sm:$0xff] %vm53, %v26
  %61 = vst.msk [vmem:[%s52 + $0x51] sm:$0xff] %vm53, %v27
  %62 = vst.msk [vmem:[%s52 + $0x61] sm:$0xff] %vm53, %v28
  %63 = vst.msk [vmem:[%s52 + $0x69] sm:$0xff] %vm53, %v29
  %64 = vst.msk [vmem:[%s52 + $0x79] sm:$0xff] %vm53, %v30
  %65 = vst.msk [vmem:[%s52 + $0x81] sm:$0xff] %vm53, %v31
  %66 = vst.msk [vmem:[%s52 + $0x91] sm:$0xff] %vm53, %v32
  %67 = vst.msk [vmem:[%s52 + $0x99] sm:$0xff] %vm53, %v33
  %68 = vst.msk [vmem:[%s52 + $0xa9] sm:$0xff] %vm53, %v34
  %69 = vst.msk [vmem:[%s52 + $0xb1] sm:$0xff] %vm53, %v35
  %70 = vst.msk [vmem:[%s52 + $0xc1] sm:$0xff] %vm53, %v36
  %71 = vst.msk [vmem:[%s52 + $0xc9] sm:$0xff] %vm53, %v37
  %72 = vst.msk [vmem:[%s52 + $0xd9] sm:$0xff] %vm53, %v38
  %73 = vst.msk [vmem:[%s52 + $0xe1] sm:$0xff] %vm53, %v39
  %74 = vst.msk [vmem:[%s52 + $0xf1] sm:$0xff] %vm53, %v40
  %75 = vst.msk [vmem:[%s52 + $0xf9] sm:$0xff] %vm53, %v41
  %76 = vst.msk [vmem:[%s52 + $0x109] sm:$0xff] %vm53, %v42
  %77 = vst.msk [vmem:[%s52 + $0x111] sm:$0xff] %vm53, %v43
  %78 = vst.msk [vmem:[%s52 + $0x121] sm:$0xff] %vm53, %v44
  %79 = vst.msk [vmem:[%s52 + $0x129] sm:$0xff] %vm53, %v45
  %80 = vst.msk [vmem:[%s52 + $0x139] sm:$0xff] %vm53, %v46
  %81 = vst.msk [vmem:[%s52 + $0x141] sm:$0xff] %vm53, %v47
  %82 = vst.msk [vmem:[%s52 + $0x151] sm:$0xff] %vm53, %v48
  %83 = vst.msk [vmem:[%s52 + $0x159] sm:$0xff] %vm53, %v49
  %84 = vst.msk [vmem:[%s52 + $0x169] sm:$0xff] %vm53, %v50
  %85 = vst.msk [vmem:[%s52 + $0x171] sm:$0xff] %vm53, %v51
  %v86 = vsel %vm17, 1, 0
  %vm87 = vcmp.eq.s32.totalorder %v86, 1
  %v88 = vsel %vm87, 0.0, %v20
  %v89 = vsel %vm87, 0.0, %v22
  %v90 = vsel %vm87, 0.0, %v24
  %v91 = vsel %vm87, 0.0, %v26
  %v92 = vsel %vm87, 0.0, %v28
  %v93 = vsel %vm87, 0.0, %v30
  %v94 = vsel %vm87, 0.0, %v32
  %v95 = vsel %vm87, 0.0, %v34
  %v96 = vsel %vm87, 0.0, %v36
  %v97 = vsel %vm87, 0.0, %v38
  %v98 = vsel %vm87, 0.0, %v40
  %v99 = vsel %vm87, 0.0, %v42
  %v100 = vsel %vm87, 0.0, %v44
  %v101 = vsel %vm87, 0.0, %v46
  %v102 = vsel %vm87, 0.0, %v48
  %v103 = vsel %vm87, 0.0, %v50
  %vm104 = vcmask 253952
  %105 = vst.msk [vmem:[%s52] sm:$0x1] %vm104, %v88
  %106 = vst.msk [vmem:[%s52 + $0x18] sm:$0x1] %vm104, %v89
  %107 = vst.msk [vmem:[%s52 + $0x30] sm:$0x1] %vm104, %v90
  %108 = vst.msk [vmem:[%s52 + $0x48] sm:$0x1] %vm104, %v91
  %109 = vst.msk [vmem:[%s52 + $0x60] sm:$0x1] %vm104, %v92
  %110 = vst.msk [vmem:[%s52 + $0x78] sm:$0x1] %vm104, %v93
  %111 = vst.msk [vmem:[%s52 + $0x90] sm:$0x1] %vm104, %v94
  %112 = vst.msk [vmem:[%s52 + $0xa8] sm:$0x1] %vm104, %v95
  %113 = vst.msk [vmem:[%s52 + $0xc0] sm:$0x1] %vm104, %v96
  %114 = vst.msk [vmem:[%s52 + $0xd8] sm:$0x1] %vm104, %v97
  %115 = vst.msk [vmem:[%s52 + $0xf0] sm:$0x1] %vm104, %v98
  %116 = vst.msk [vmem:[%s52 + $0x108] sm:$0x1] %vm104, %v99
  %117 = vst.msk [vmem:[%s52 + $0x120] sm:$0x1] %vm104, %v100
  %118 = vst.msk [vmem:[%s52 + $0x138] sm:$0x1] %vm104, %v101
  %119 = vst.msk [vmem:[%s52 + $0x150] sm:$0x1] %vm104, %v102
  %120 = vst.msk [vmem:[%s52 + $0x168] sm:$0x1] %vm104, %v103
  %v121 = vsel %vm19, 1, 0
  %vm122 = vcmp.eq.s32.totalorder %v121, 1
  %139 = vst [vmem:[#allocation1] sm:$0xff] %v21
  %s140 = scalar_lea.vmem [#allocation1], 7
  %v141 = vld [vmem:[%s140] ss:$9 sm:$0xff]
  %142 = vst [vmem:[#allocation1] sm:$0xff] %v23
  %v143 = vld [vmem:[%s140] ss:$9 sm:$0xff]
  %144 = vst [vmem:[#allocation1] sm:$0xff] %v25
  %v145 = vld [vmem:[%s140] ss:$9 sm:$0xff]
  %146 = vst [vmem:[#allocation1] sm:$0xff] %v27
  %v147 = vld [vmem:[%s140] ss:$9 sm:$0xff]
  %148 = vst [vmem:[#allocation1] sm:$0xff] %v29
  %v149 = vld [vmem:[%s140] ss:$9 sm:$0xff]
  %150 = vst [vmem:[#allocation1] sm:$0xff] %v31
  %v151 = vld [vmem:[%s140] ss:$9 sm:$0xff]
  %152 = vst [vmem:[#allocation1] sm:$0xff] %v33
  %v153 = vld [vmem:[%s140] ss:$9 sm:$0xff]
  %154 = vst [vmem:[#allocation1] sm:$0xff] %v35
  %v155 = vld [vmem:[%s140] ss:$9 sm:$0xff]
  %156 = vst [vmem:[#allocation1] sm:$0xff] %v37
  %v157 = vld [vmem:[%s140] ss:$9 sm:$0xff]
  %158 = vst [vmem:[#allocation1] sm:$0xff] %v39
  %v159 = vld [vmem:[%s140] ss:$9 sm:$0xff]
  %160 = vst [vmem:[#allocation1] sm:$0xff] %v41
  %v161 = vld [vmem:[%s140] ss:$9 sm:$0xff]
  %162 = vst [vmem:[#allocation1] sm:$0xff] %v43
  %v163 = vld [vmem:[%s140] ss:$9 sm:$0xff]
  %164 = vst [vmem:[#allocation1] sm:$0xff] %v45
  %v165 = vld [vmem:[%s140] ss:$9 sm:$0xff]
  %166 = vst [vmem:[#allocation1] sm:$0xff] %v47
  %v167 = vld [vmem:[%s140] ss:$9 sm:$0xff]
  %168 = vst [vmem:[#allocation1] sm:$0xff] %v49
  %v169 = vld [vmem:[%s140] ss:$9 sm:$0xff]
  %170 = vst [vmem:[#allocation1] sm:$0xff] %v51
  %v171 = vld [vmem:[%s140] ss:$9 sm:$0xff]
  %v188 = vsel %vm122, 0.0, %v141
  %v189 = vsel %vm122, 0.0, %v143
  %v190 = vsel %vm122, 0.0, %v145
  %v191 = vsel %vm122, 0.0, %v147
  %v192 = vsel %vm122, 0.0, %v149
  %v193 = vsel %vm122, 0.0, %v151
  %v194 = vsel %vm122, 0.0, %v153
  %v195 = vsel %vm122, 0.0, %v155
  %v196 = vsel %vm122, 0.0, %v157
  %v197 = vsel %vm122, 0.0, %v159
  %v198 = vsel %vm122, 0.0, %v161
  %v199 = vsel %vm122, 0.0, %v163
  %v200 = vsel %vm122, 0.0, %v165
  %v201 = vsel %vm122, 0.0, %v167
  %v202 = vsel %vm122, 0.0, %v169
  %v203 = vsel %vm122, 0.0, %v171
  %204 = vst.msk [vmem:[%s52 + $0x11] sm:$0x1] %vm104, %v188
  %205 = vst.msk [vmem:[%s52 + $0x29] sm:$0x1] %vm104, %v189
  %206 = vst.msk [vmem:[%s52 + $0x41] sm:$0x1] %vm104, %v190
  %207 = vst.msk [vmem:[%s52 + $0x59] sm:$0x1] %vm104, %v191
  %208 = vst.msk [vmem:[%s52 + $0x71] sm:$0x1] %vm104, %v192
  %209 = vst.msk [vmem:[%s52 + $0x89] sm:$0x1] %vm104, %v193
  %210 = vst.msk [vmem:[%s52 + $0xa1] sm:$0x1] %vm104, %v194
  %211 = vst.msk [vmem:[%s52 + $0xb9] sm:$0x1] %vm104, %v195
  %212 = vst.msk [vmem:[%s52 + $0xd1] sm:$0x1] %vm104, %v196
  %213 = vst.msk [vmem:[%s52 + $0xe9] sm:$0x1] %vm104, %v197
  %214 = vst.msk [vmem:[%s52 + $0x101] sm:$0x1] %vm104, %v198
  %215 = vst.msk [vmem:[%s52 + $0x119] sm:$0x1] %vm104, %v199
  %216 = vst.msk [vmem:[%s52 + $0x131] sm:$0x1] %vm104, %v200
  %217 = vst.msk [vmem:[%s52 + $0x149] sm:$0x1] %vm104, %v201
  %218 = vst.msk [vmem:[%s52 + $0x161] sm:$0x1] %vm104, %v202
  %219 = vst.msk [vmem:[%s52 + $0x179] sm:$0x1] %vm104, %v203
  %v220 = vsel %vm13, 1, 0
  %v221 = vperm.slane %v220, 0
  %vm222 = vcmp.eq.s32.totalorder %v221, 1
  %v223 = vsel %vm222, 0.0, %v20
  %v224 = vsel %vm222, 0.0, %v21
  %225 = vst.msk [vmem:[%s2 + $0x1] sm:$0xff] %vm53, %v223
  %226 = vst.msk [vmem:[%s2 + $0x9] sm:$0xff] %vm53, %v224
  %vm227 = vmor %vm13, %vm17
  %v228 = vsel %vm227, 0.0, %v20
  %229 = vst.msk [vmem:[%s2] sm:$0x1] %vm104, %v228
  %vm230 = vmor %vm13, %vm19
  %231 = vst [vmem:[#allocation1] sm:$0xff] %v21
  %s232 = scalar_lea.vmem [#allocation1], 7
  %v233 = vld [vmem:[%s232] ss:$9 sm:$0xff]
  %v235 = vsel %vm230, 0.0, %v233
  %236 = vst.msk [vmem:[%s2 + $0x11] sm:$0x1] %vm104, %v235
  %vm237 = vmand %vm15, 1
  %v238 = vsel %vm237, 1, 0
  %v239 = vperm.slane %v238, 0
  %vm240 = vcmp.eq.s32.totalorder %v239, 1
  %v241 = vsel %vm240, 0.0, %v50
  %v242 = vsel %vm240, 0.0, %v51
  %s243 = scalar_lea.vmem %s2, 408
  %244 = vst.msk [vmem:[%s243 + $0x1] sm:$0xff] %vm53, %v241
  %245 = vst.msk [vmem:[%s243 + $0x9] sm:$0xff] %vm53, %v242
  %vm246 = vmor %vm237, %vm17
  %v247 = vsel %vm246, 0.0, %v50
  %248 = vst.msk [vmem:[%s243] sm:$0x1] %vm104, %v247
  %vm249 = vmor %vm237, %vm19
  %250 = vst [vmem:[#allocation1] sm:$0xff] %v51
  %s251 = scalar_lea.vmem [#allocation1], 7
  %v252 = vld [vmem:[%s251] ss:$9 sm:$0xff]
  %v254 = vsel %vm249, 0.0, %v252
  %255 = vst.msk [vmem:[%s243 + $0x11] sm:$0x1] %vm104, %v254
  // Predicated region
  $region10: #{replication_pad2d.1} parent=0 // pred_check
    _
  $region11: #{replication_pad2d.1} parent=0 // pred_check_branch
    %257 = sbr.rel (0) target = $region13
  $region12: #{replication_pad2d.1} parent=0 // pred_region
    _
  $region13: #{replication_pad2d.1} parent=0 // pred_fallthru
    _
  // Predicated region
  $region14: #{replication_pad2d.1} parent=0 // pred_check
    _
  $region15: #{replication_pad2d.1} parent=0 // pred_check_branch
    %259 = sbr.rel (0) target = $region17
  $region16: #{replication_pad2d.1} parent=0 // pred_region
    _
  $region17: #{replication_pad2d.1} parent=0 // pred_fallthru
    _

</llo_original>
